<compile_context>
chip_gen: v7x
topology: tpu7x:2x2x1
jax: 0.10.0
libtpu: 0.0.40
codegen_flags: <defaults>
</compile_context>

<pallas_src>
import functools

import jax
import jax.numpy as jnp
from jax.experimental import pallas as pl
from jax.experimental.pallas import tpu as pltpu


def ensemble_fused_kernel(patches_ref, w1_ref, b1_ref, pool_ref, w2_ref, b2_ref, out_ref):
    """patches_ref: [N*HW, K_pad]   bf16  im2col patches (feature order kh,kw,c; zero padded)
       w1_ref:      [K_pad, H_pad]  bf16  all members' conv weights fused along hidden
       b1_ref:      [1, H_pad]      f32   fused conv bias
       pool_ref:    [ROW_pad, N*HW] f32   mean-pool matrix (1/HW folded in, rows padded to 8)
       w2_ref:      [H_pad, CLS_pad]f32   fc weights, ensemble weights folded, members stacked
       b2_ref:      [1, CLS_pad]    f32   ensemble-weighted fc bias
       out_ref:     [ROW_pad, CLS_pad] f32
    """
    # Conv for ALL ensemble members at once (hidden dims concatenated): one bf16 MXU matmul
    # with f32 accumulation, then f32 bias add + ReLU on the VPU.
    h = jnp.dot(patches_ref[...], w1_ref[...], preferred_element_type=jnp.float32)
    h = jnp.maximum(h + b1_ref[...], 0.0)

    # Global average pool as a small f32 matmul (no in-kernel reshape/reduce); result is
    # already padded to a full 8-sublane tile.
    pooled = jnp.dot(pool_ref[...], h, preferred_element_type=jnp.float32)

    # Fused weighted classifier, entirely in f32; single unmasked (8,128) store.
    out_ref[...] = (jnp.dot(pooled, w2_ref[...], preferred_element_type=jnp.float32)
                    + b2_ref[...])


def pack_ensemble_params(ens_weights, conv_w, conv_b, fc_w, fc_b, x_shape):
    """One-time packing of per-member parameters into fused, MXU-friendly operands.

    conv_w: [NM, C*9, HIDDEN] (rows in PyTorch (c, kh, kw) order), conv_b: [NM, HIDDEN]
    fc_w:   [NM, HIDDEN, CLASSES], fc_b: [NM, CLASSES], ens_weights: [NM] (normalized).
    Returns (w1_p bf16, b1 f32, pool f32, w2 f32, b2 f32).
    """
    n, c, hgt, wid = x_shape
    num_models, ckk, hidden = conv_w.shape
    num_classes = fc_w.shape[-1]
    hw = hgt * wid
    h_fused = num_models * hidden
    assert ckk == 9 * c

    # MXU/vreg-friendly padded sizes (lane dim = 128).  NOTE: if h_fused / num_classes ever
    # exceed 128, pad to multiples of 256 for the v6e/v7x 2x256^2 MXU.
    k_pad, h_pad, cls_pad = 128, 128, 128
    assert ckk <= k_pad and h_fused <= h_pad and num_classes <= cls_pad
    row_pad = max(8, ((n + 7) // 8) * 8)   # output sublane padding -> unmasked stores

    # Conv weights: reorder rows (c,kh,kw) -> (kh,kw,c) to match the NHWC shifted-slice
    # im2col in the wrapper, stack all members along the hidden axis, pad, cast bf16.
    w_r = conv_w.reshape(num_models, c, 3, 3, hidden).transpose(0, 2, 3, 1, 4)
    w_r = w_r.reshape(num_models, ckk, hidden)
    w1 = jnp.zeros((k_pad, h_pad), jnp.float32)
    w1 = w1.at[:ckk, :h_fused].set(jnp.transpose(w_r, (1, 0, 2)).reshape(ckk, h_fused))
    w1_p = w1.astype(jnp.bfloat16)

    # Fused conv bias (f32, broadcast-added to the f32 accumulator in-kernel).
    b1 = jnp.zeros((1, h_pad), jnp.float32).at[0, :h_fused].set(conv_b.reshape(h_fused))

    # Mean-pool matrix: row i sums sample i's HW rows and divides by HW; padded rows are 0.
    pool = jnp.repeat(jnp.eye(row_pad, n, dtype=jnp.float32), hw, axis=1) / hw

    # Fused classifier, kept in f32: ensemble weights folded into fc weights, members
    # stacked along the contraction dim (same order as w1's hidden columns).
    w2 = jnp.zeros((h_pad, cls_pad), jnp.float32)
    fc_scaled = fc_w * ens_weights[:, None, None]
    w2 = w2.at[:h_fused, :num_classes].set(fc_scaled.reshape(h_fused, num_classes))

    # Ensemble-weighted fc bias.
    b2 = jnp.zeros((1, cls_pad), jnp.float32).at[0, :num_classes].set(
        jnp.sum(ens_weights[:, None] * fc_b, axis=0))

    return w1_p, b1, pool, w2, b2


@functools.partial(jax.jit, static_argnames=("num_classes",))
def ensemble_forward(x_nchw, w1_p, b1_p, pool_p, w2_p, b2_p, *, num_classes):
    """x_nchw: [N, C, H, W] f32.  Packed params from pack_ensemble_params.  -> [N, CLASSES] f32."""
    n, c, hgt, wid = x_nchw.shape
    rows = n * hgt * wid
    k_pad = w1_p.shape[0]
    cls_pad = w2_p.shape[1]
    row_pad = pool_p.shape[0]
    ckk = 9 * c
    assert rows == pool_p.shape[1] and ckk <= k_pad

    # Light bf16 glue: NHWC transpose, one spatial pad, 9 shifted slices concatenated along
    # the feature axis (order kh,kw,c), one zero-pad of the feature dim to 128 lanes.
    x_nhwc = jnp.transpose(x_nchw.astype(jnp.bfloat16), (0, 2, 3, 1))
    x_sp = jnp.pad(x_nhwc, ((0, 0), (1, 1), (1, 1), (0, 0)))
    patches = jnp.concatenate(
        [x_sp[:, dh:dh + hgt, dw:dw + wid, :] for dh in range(3) for dw in range(3)],
        axis=-1).reshape(rows, ckk)
    patches_p = jnp.pad(patches, ((0, 0), (0, k_pad - ckk)))

    out_padded = pl.pallas_call(
        ensemble_fused_kernel,
        out_shape=jax.ShapeDtypeStruct((row_pad, cls_pad), jnp.float32),
        in_specs=[pl.BlockSpec(memory_space=pltpu.MemorySpace.VMEM)] * 6,
        out_specs=pl.BlockSpec(memory_space=pltpu.MemorySpace.VMEM),
    )(patches_p, w1_p, b1_p, pool_p, w2_p, b2_p)

    return out_padded[:n, :num_classes]


def _im2col_3x3_ref(x_nchw):
    """Reference im2col: [N,C,H,W] -> [N*H*W, C*9], inner order (c,kh,kw) == PyTorch weight order."""
    n, c, hgt, wid = x_nchw.shape
    x_pad = jnp.pad(x_nchw, ((0, 0), (0, 0), (1, 1), (1, 1)))
    patches = jnp.stack(
        [x_pad[:, :, di:di + hgt, dj:dj + wid] for di in range(3) for dj in range(3)],
        axis=2,
    )  # [N, C, 9, H, W]
    return (patches.transpose(0, 3, 4, 1, 2)
            .reshape(n * hgt * wid, c * 9)
            .astype(jnp.float32))


def ensemble_reference(x_nchw, ens_weights, conv_w, conv_b, fc_w, fc_b):
    """Pure-JAX f32 reference with the exact PyTorch-equivalent math."""
    n, c, hgt, wid = x_nchw.shape
    patches = _im2col_3x3_ref(x_nchw)
    out = jnp.zeros((n, fc_w.shape[-1]), jnp.float32)
    for m in range(conv_w.shape[0]):
        h = jnp.maximum(patches @ conv_w[m] + conv_b[m][None, :], 0.0)
        pooled = jnp.mean(h.reshape(n, hgt * wid, -1), axis=1)
        logits = pooled @ fc_w[m] + fc_b[m][None, :]
        out = out + ens_weights[m] * logits
    return out


if __name__ == "__main__":
    # Small shapes consistent with the module's forward.
    N, C, H, W = 2, 4, 16, 16
    HIDDEN, CLASSES, NUM_MODELS = 32, 10, 3

    key = jax.random.PRNGKey(0)
    kx, k1, k2, k3, k4 = jax.random.split(key, 5)

    x = jax.random.normal(kx, (N, C, H, W), jnp.float32)

    # Per-member parameters.  Conv weights stored pre-reshaped:
    # PyTorch (O, C, 3, 3) -> (C*9, O) with inner row order (c, kh, kw), stacked over models.
    conv_w = 0.1 * jax.random.normal(k1, (NUM_MODELS, C * 9, HIDDEN), jnp.float32)
    conv_b = 0.1 * jax.random.normal(k2, (NUM_MODELS, HIDDEN), jnp.float32)
    fc_w = 0.1 * jax.random.normal(k3, (NUM_MODELS, HIDDEN, CLASSES), jnp.float32)
    fc_b = 0.1 * jax.random.normal(k4, (NUM_MODELS, CLASSES), jnp.float32)

    # EnsembleModel default: weights = ones(num_models) / num_models
    ens_weights = jnp.ones((NUM_MODELS,), jnp.float32) / NUM_MODELS

    # One-time packing (hoisted out of the per-call hot path).
    packed = pack_ensemble_params(ens_weights, conv_w, conv_b, fc_w, fc_b, x.shape)
    packed = jax.block_until_ready(packed)

    out = ensemble_forward(x, *packed, num_classes=CLASSES)
    out = jax.block_until_ready(out)

    ref = ensemble_reference(x, ens_weights, conv_w, conv_b, fc_w, fc_b)
    assert out.shape == (N, CLASSES)
    # bf16 conv inputs with f32 accumulation; pooling + classifier are fully f32.
    assert jnp.allclose(out, ref, atol=1e-2, rtol=1e-2), "mismatch vs reference"

    print("KERNEL_OK")
</pallas_src>

<mosaic_0001>
module attributes {stable_mosaic.version = 11 : i64} {
  func.func @ensemble_fused_kernel(%arg0: memref<512x128xbf16, #tpu.memory_space<vmem>>, %arg1: memref<128x128xbf16, #tpu.memory_space<vmem>>, %arg2: memref<1x128xf32, #tpu.memory_space<vmem>>, %arg3: memref<8x512xf32, #tpu.memory_space<vmem>>, %arg4: memref<128x128xf32, #tpu.memory_space<vmem>>, %arg5: memref<1x128xf32, #tpu.memory_space<vmem>>, %arg6: memref<8x128xf32, #tpu.memory_space<vmem>>) attributes {dimension_semantics = [], scalar_prefetch = 0 : i64, scratch_operands = 0 : i64, tpu.core_type = #tpu.core_type<tc>} {
    %c0 = arith.constant 0 : index
    %c0_0 = arith.constant 0 : index
    %0 = vector.load %arg0[%c0, %c0_0] : memref<512x128xbf16, #tpu.memory_space<vmem>>, vector<512x128xbf16>
    %c0_1 = arith.constant 0 : index
    %c0_2 = arith.constant 0 : index
    %1 = vector.load %arg1[%c0_1, %c0_2] : memref<128x128xbf16, #tpu.memory_space<vmem>>, vector<128x128xbf16>
    %cst = arith.constant dense<0.000000e+00> : vector<512x128xf32>
    %2 = tpu.matmul %0, %1, %cst {dimension_numbers = #tpu.dot_dimension_numbers<[1], [0], [0], [1], [0, 0, 1, 1], [], []>} : vector<512x128xbf16>, vector<128x128xbf16>, vector<512x128xf32> -> vector<512x128xf32>
    %c0_3 = arith.constant 0 : index
    %c0_4 = arith.constant 0 : index
    %3 = vector.load %arg2[%c0_3, %c0_4] : memref<1x128xf32, #tpu.memory_space<vmem>>, vector<1x128xf32>
    %4 = vector.broadcast %3 : vector<1x128xf32> to vector<512x128xf32>
    %5 = arith.addf %2, %4 : vector<512x128xf32>
    %cst_5 = arith.constant 0.000000e+00 : f32
    %6 = vector.broadcast %cst_5 : f32 to vector<512x128xf32>
    %7 = arith.maximumf %5, %6 : vector<512x128xf32>
    %c0_6 = arith.constant 0 : index
    %c0_7 = arith.constant 0 : index
    %8 = vector.load %arg3[%c0_6, %c0_7] : memref<8x512xf32, #tpu.memory_space<vmem>>, vector<8x512xf32>
    %cst_8 = arith.constant dense<0.000000e+00> : vector<8x128xf32>
    %9 = tpu.matmul %8, %7, %cst_8 {dimension_numbers = #tpu.dot_dimension_numbers<[1], [0], [0], [1], [0, 0, 1, 1], [], []>} : vector<8x512xf32>, vector<512x128xf32>, vector<8x128xf32> -> vector<8x128xf32>
    %c0_9 = arith.constant 0 : index
    %c0_10 = arith.constant 0 : index
    %10 = vector.load %arg4[%c0_9, %c0_10] : memref<128x128xf32, #tpu.memory_space<vmem>>, vector<128x128xf32>
    %cst_11 = arith.constant dense<0.000000e+00> : vector<8x128xf32>
    %11 = tpu.matmul %9, %10, %cst_11 {dimension_numbers = #tpu.dot_dimension_numbers<[1], [0], [0], [1], [0, 0, 1, 1], [], []>} : vector<8x128xf32>, vector<128x128xf32>, vector<8x128xf32> -> vector<8x128xf32>
    %c0_12 = arith.constant 0 : index
    %c0_13 = arith.constant 0 : index
    %12 = vector.load %arg5[%c0_12, %c0_13] : memref<1x128xf32, #tpu.memory_space<vmem>>, vector<1x128xf32>
    %13 = vector.broadcast %12 : vector<1x128xf32> to vector<8x128xf32>
    %14 = arith.addf %11, %13 : vector<8x128xf32>
    %c0_14 = arith.constant 0 : index
    %c0_15 = arith.constant 0 : index
    %15 = vector.load %arg6[%c0_14, %c0_15] : memref<8x128xf32, #tpu.memory_space<vmem>>, vector<8x128xf32>
    tpu.vector_store %arg6[%c0_14, %c0_15], %14 {strides = array<i32>} : memref<8x128xf32, #tpu.memory_space<vmem>>, vector<8x128xf32>,
    return
  }
}

</mosaic_0001>

<llo_original>
// kernel: ensemble_forward.1
$region0: #{ensemble_forward.1}
  #allocation0 [shape = 'u32[]', space=smem, size = 0x4, offset = 0x4, fixed_abs, tag = 'smem constant byte address 0x4 - core index']
  #allocation1 [shape = 'u32[144,128]{1,0:T(1,128)}', space=vmem, size = 0x12000, scoped, tag = 'internal scratch']
  %s0 = inlined_call_operand.vmem [shape: bf16[512,128], index: 0, kind: input, shape index: {}]
  %s1 = inlined_call_operand.vmem [shape: bf16[128,128], index: 1, kind: input, shape index: {}]
  %s2 = inlined_call_operand.vmem [shape: f32[1,128], index: 2, kind: input, shape index: {}]
  %s3 = inlined_call_operand.vmem [shape: f32[8,512], index: 3, kind: input, shape index: {}]
  %s4 = inlined_call_operand.vmem [shape: f32[128,128], index: 4, kind: input, shape index: {}]
  %s5 = inlined_call_operand.vmem [shape: f32[1,128], index: 5, kind: input, shape index: {}]
  %s6 = inlined_call_operand.vmem [shape: f32[8,128], index: 6, kind: output, shape index: {}]
  %s7 = sld [smem:[#allocation0]]
  $region34: #{ensemble_forward.1} parent=0
    _
  %s9 = ssub.s32 1, %s7
  %s10 = scalar_select 0, %s9, %s7
  // Predicated region
  $region2: #{ensemble_forward.1} parent=0 // pred_check
    _
  $region3: #{ensemble_forward.1} parent=0 // pred_check_branch
    %12 = sbr.rel (0) target = $region5
  $region4: #{ensemble_forward.1} parent=0 // pred_region
    _
  $region5: #{ensemble_forward.1} parent=0 // pred_fallthru
    _
  // Predicated region
  $region6: #{ensemble_forward.1} parent=0 // pred_check
    _
  $region7: #{ensemble_forward.1} parent=0 // pred_check_branch
    %14 = sbr.rel (0) target = $region9
  $region8: #{ensemble_forward.1} parent=0 // pred_region
    _
  $region9: #{ensemble_forward.1} parent=0 // pred_fallthru
    _
  // Predicated region
  $region10: #{ensemble_forward.1} parent=0 // pred_check
    _
  $region11: #{ensemble_forward.1} parent=0 // pred_check_branch
    %16 = sbr.rel (0) target = $region13
  $region12: #{ensemble_forward.1} parent=0 // pred_region
    _
  $region13: #{ensemble_forward.1} parent=0 // pred_fallthru
    _
  // Predicated region
  $region14: #{ensemble_forward.1} parent=0 // pred_check
    _
  $region15: #{ensemble_forward.1} parent=0 // pred_check_branch
    %18 = sbr.rel (0) target = $region17
  $region16: #{ensemble_forward.1} parent=0 // pred_region
    _
  $region17: #{ensemble_forward.1} parent=0 // pred_fallthru
    _
  // Predicated region
  $region18: #{ensemble_forward.1} parent=0 // pred_check
    _
  $region19: #{ensemble_forward.1} parent=0 // pred_check_branch
    %20 = sbr.rel (0) target = $region21
  $region20: #{ensemble_forward.1} parent=0 // pred_region
    _
  $region21: #{ensemble_forward.1} parent=0 // pred_fallthru
    _
  // Predicated region
  $region22: #{ensemble_forward.1} parent=0 // pred_check
    _
  $region23: #{ensemble_forward.1} parent=0 // pred_check_branch
    %22 = sbr.rel (0) target = $region25
  $region24: #{ensemble_forward.1} parent=0 // pred_region
    _
  $region25: #{ensemble_forward.1} parent=0 // pred_fallthru
    _
  %v24 = vld [vmem:[%s0] sm:$0xf]
  %v25 = vld [vmem:[%s0 + $0x4] sm:$0xf]
  %v26 = vld [vmem:[%s0 + $0x8] sm:$0xf]
  %v27 = vld [vmem:[%s0 + $0xc] sm:$0xf]
  %v28 = vld [vmem:[%s0 + $0x10] sm:$0xf]
  %v29 = vld [vmem:[%s0 + $0x14] sm:$0xf]
  %v30 = vld [vmem:[%s0 + $0x18] sm:$0xf]
  %v31 = vld [vmem:[%s0 + $0x1c] sm:$0xf]
  %v32 = vld [vmem:[%s0 + $0x20] sm:$0xf]
  %v33 = vld [vmem:[%s0 + $0x24] sm:$0xf]
  %v34 = vld [vmem:[%s0 + $0x28] sm:$0xf]
  %v35 = vld [vmem:[%s0 + $0x2c] sm:$0xf]
  %v36 = vld [vmem:[%s0 + $0x30] sm:$0xf]
  %v37 = vld [vmem:[%s0 + $0x34] sm:$0xf]
  %v38 = vld [vmem:[%s0 + $0x38] sm:$0xf]
  %v39 = vld [vmem:[%s0 + $0x3c] sm:$0xf]
  %v40 = vld [vmem:[%s0 + $0x40] sm:$0xf]
  %v41 = vld [vmem:[%s0 + $0x44] sm:$0xf]
  %v42 = vld [vmem:[%s0 + $0x48] sm:$0xf]
  %v43 = vld [vmem:[%s0 + $0x4c] sm:$0xf]
  %v44 = vld [vmem:[%s0 + $0x50] sm:$0xf]
  %v45 = vld [vmem:[%s0 + $0x54] sm:$0xf]
  %v46 = vld [vmem:[%s0 + $0x58] sm:$0xf]
  %v47 = vld [vmem:[%s0 + $0x5c] sm:$0xf]
  %v48 = vld [vmem:[%s0 + $0x60] sm:$0xf]
  %v49 = vld [vmem:[%s0 + $0x64] sm:$0xf]
  %v50 = vld [vmem:[%s0 + $0x68] sm:$0xf]
  %v51 = vld [vmem:[%s0 + $0x6c] sm:$0xf]
  %v52 = vld [vmem:[%s0 + $0x70] sm:$0xf]
  %v53 = vld [vmem:[%s0 + $0x74] sm:$0xf]
  %v54 = vld [vmem:[%s0 + $0x78] sm:$0xf]
  %v55 = vld [vmem:[%s0 + $0x7c] sm:$0xf]
  %v56 = vld [vmem:[%s0 + $0x80] sm:$0xf]
  %v57 = vld [vmem:[%s0 + $0x84] sm:$0xf]
  %v58 = vld [vmem:[%s0 + $0x88] sm:$0xf]
  %v59 = vld [vmem:[%s0 + $0x8c] sm:$0xf]
  %v60 = vld [vmem:[%s0 + $0x90] sm:$0xf]
  %v61 = vld [vmem:[%s0 + $0x94] sm:$0xf]
  %v62 = vld [vmem:[%s0 + $0x98] sm:$0xf]
  %v63 = vld [vmem:[%s0 + $0x9c] sm:$0xf]
  %v64 = vld [vmem:[%s0 + $0xa0] sm:$0xf]
  %v65 = vld [vmem:[%s0 + $0xa4] sm:$0xf]
  %v66 = vld [vmem:[%s0 + $0xa8] sm:$0xf]
  %v67 = vld [vmem:[%s0 + $0xac] sm:$0xf]
  %v68 = vld [vmem:[%s0 + $0xb0] sm:$0xf]
  %v69 = vld [vmem:[%s0 + $0xb4] sm:$0xf]
  %v70 = vld [vmem:[%s0 + $0xb8] sm:$0xf]
  %v71 = vld [vmem:[%s0 + $0xbc] sm:$0xf]
  %v72 = vld [vmem:[%s0 + $0xc0] sm:$0xf]
  %v73 = vld [vmem:[%s0 + $0xc4] sm:$0xf]
  %v74 = vld [vmem:[%s0 + $0xc8] sm:$0xf]
  %v75 = vld [vmem:[%s0 + $0xcc] sm:$0xf]
  %v76 = vld [vmem:[%s0 + $0xd0] sm:$0xf]
  %v77 = vld [vmem:[%s0 + $0xd4] sm:$0xf]
  %v78 = vld [vmem:[%s0 + $0xd8] sm:$0xf]
  %v79 = vld [vmem:[%s0 + $0xdc] sm:$0xf]
  %v80 = vld [vmem:[%s0 + $0xe0] sm:$0xf]
  %v81 = vld [vmem:[%s0 + $0xe4] sm:$0xf]
  %v82 = vld [vmem:[%s0 + $0xe8] sm:$0xf]
  %v83 = vld [vmem:[%s0 + $0xec] sm:$0xf]
  %v84 = vld [vmem:[%s0 + $0xf0] sm:$0xf]
  %v85 = vld [vmem:[%s0 + $0xf4] sm:$0xf]
  %v86 = vld [vmem:[%s0 + $0xf8] sm:$0xf]
  %v87 = vld [vmem:[%s0 + $0xfc] sm:$0xf]
  %v88 = vld [vmem:[%s1] sm:$0xf]
  %v89 = vld [vmem:[%s1 + $0x4] sm:$0xf]
  %v90 = vld [vmem:[%s1 + $0x8] sm:$0xf]
  %v91 = vld [vmem:[%s1 + $0xc] sm:$0xf]
  %v92 = vld [vmem:[%s1 + $0x10] sm:$0xf]
  %v93 = vld [vmem:[%s1 + $0x14] sm:$0xf]
  %v94 = vld [vmem:[%s1 + $0x18] sm:$0xf]
  %v95 = vld [vmem:[%s1 + $0x1c] sm:$0xf]
  %v96 = vld [vmem:[%s1 + $0x20] sm:$0xf]
  %v97 = vld [vmem:[%s1 + $0x24] sm:$0xf]
  %v98 = vld [vmem:[%s1 + $0x28] sm:$0xf]
  %v99 = vld [vmem:[%s1 + $0x2c] sm:$0xf]
  %v100 = vld [vmem:[%s1 + $0x30] sm:$0xf]
  %v101 = vld [vmem:[%s1 + $0x34] sm:$0xf]
  %v102 = vld [vmem:[%s1 + $0x38] sm:$0xf]
  %v103 = vld [vmem:[%s1 + $0x3c] sm:$0xf]
  %v104 = vld [vmem:[%s2] sm:$0x1]
  %v106 = vlaneseq
  %v107 = vshrl.u32 %v106, 7
  %v108 = vsub.s32 0, %v107
  %v109 = vrot.slane %v104, %v108
  %v175 = vunpack.c.l.b16 %v24
  %v176 = vunpack.c.l.b16 %v25
  %v177 = vunpack.c.l.b16 %v26
  %v178 = vunpack.c.l.b16 %v27
  %v179 = vunpack.c.l.b16 %v28
  %v180 = vunpack.c.l.b16 %v29
  %v181 = vunpack.c.l.b16 %v30
  %v182 = vunpack.c.l.b16 %v31
  %v183 = vunpack.c.l.b16 %v32
  %v184 = vunpack.c.l.b16 %v33
  %v185 = vunpack.c.l.b16 %v34
  %v186 = vunpack.c.l.b16 %v35
  %v187 = vunpack.c.l.b16 %v36
  %v188 = vunpack.c.l.b16 %v37
  %v189 = vunpack.c.l.b16 %v38
  %v190 = vunpack.c.l.b16 %v39
  %v191 = vunpack.c.l.b16 %v40
  %v192 = vunpack.c.l.b16 %v41
  %v193 = vunpack.c.l.b16 %v42
  %v194 = vunpack.c.l.b16 %v43
  %v195 = vunpack.c.l.b16 %v44
  %v196 = vunpack.c.l.b16 %v45
  %v197 = vunpack.c.l.b16 %v46
  %v198 = vunpack.c.l.b16 %v47
  %v199 = vunpack.c.l.b16 %v48
  %v200 = vunpack.c.l.b16 %v49
  %v201 = vunpack.c.l.b16 %v50
  %v202 = vunpack.c.l.b16 %v51
  %v203 = vunpack.c.l.b16 %v52
  %v204 = vunpack.c.l.b16 %v53
  %v205 = vunpack.c.l.b16 %v54
  %v206 = vunpack.c.l.b16 %v55
  %v207 = vunpack.c.l.b16 %v56
  %v208 = vunpack.c.l.b16 %v57
  %v209 = vunpack.c.l.b16 %v58
  %v210 = vunpack.c.l.b16 %v59
  %v211 = vunpack.c.l.b16 %v60
  %v212 = vunpack.c.l.b16 %v61
  %v213 = vunpack.c.l.b16 %v62
  %v214 = vunpack.c.l.b16 %v63
  %v215 = vunpack.c.l.b16 %v64
  %v216 = vunpack.c.l.b16 %v65
  %v217 = vunpack.c.l.b16 %v66
  %v218 = vunpack.c.l.b16 %v67
  %v219 = vunpack.c.l.b16 %v68
  %v220 = vunpack.c.l.b16 %v69
  %v221 = vunpack.c.l.b16 %v70
  %v222 = vunpack.c.l.b16 %v71
  %v223 = vunpack.c.l.b16 %v72
  %v224 = vunpack.c.l.b16 %v73
  %v225 = vunpack.c.l.b16 %v74
  %v226 = vunpack.c.l.b16 %v75
  %v227 = vunpack.c.l.b16 %v76
  %v228 = vunpack.c.l.b16 %v77
  %v229 = vunpack.c.l.b16 %v78
  %v230 = vunpack.c.l.b16 %v79
  %v231 = vunpack.c.l.b16 %v80
  %v232 = vunpack.c.l.b16 %v81
  %v233 = vunpack.c.l.b16 %v82
  %v234 = vunpack.c.l.b16 %v83
  %v235 = vunpack.c.l.b16 %v84
  %v236 = vunpack.c.l.b16 %v85
  %v237 = vunpack.c.l.b16 %v86
  %v238 = vunpack.c.l.b16 %v87
  %v239 = vpack.c.b16 %v176, %v175
  %v240 = vpack.c.b16 %v178, %v177
  %v241 = vpack.c.b16 %v180, %v179
  %v242 = vpack.c.b16 %v182, %v181
  %v243 = vpack.c.b16 %v184, %v183
  %v244 = vpack.c.b16 %v186, %v185
  %v245 = vpack.c.b16 %v188, %v187
  %v246 = vpack.c.b16 %v190, %v189
  %v247 = vpack.c.b16 %v192, %v191
  %v248 = vpack.c.b16 %v194, %v193
  %v249 = vpack.c.b16 %v196, %v195
  %v250 = vpack.c.b16 %v198, %v197
  %v251 = vpack.c.b16 %v200, %v199
  %v252 = vpack.c.b16 %v202, %v201
  %v253 = vpack.c.b16 %v204, %v203
  %v254 = vpack.c.b16 %v206, %v205
  %v255 = vpack.c.b16 %v208, %v207
  %v256 = vpack.c.b16 %v210, %v209
  %v257 = vpack.c.b16 %v212, %v211
  %v258 = vpack.c.b16 %v214, %v213
  %v259 = vpack.c.b16 %v216, %v215
  %v260 = vpack.c.b16 %v218, %v217
  %v261 = vpack.c.b16 %v220, %v219
  %v262 = vpack.c.b16 %v222, %v221
  %v263 = vpack.c.b16 %v224, %v223
  %v264 = vpack.c.b16 %v226, %v225
  %v265 = vpack.c.b16 %v228, %v227
  %v266 = vpack.c.b16 %v230, %v229
  %v267 = vpack.c.b16 %v232, %v231
  %v268 = vpack.c.b16 %v234, %v233
  %v269 = vpack.c.b16 %v236, %v235
  %v270 = vpack.c.b16 %v238, %v237
  %v319 = vunpack.c.l.b16 %v88
  %v320 = vunpack.c.l.b16 %v89
  %v321 = vunpack.c.l.b16 %v90
  %v322 = vunpack.c.l.b16 %v91
  %v323 = vunpack.c.l.b16 %v92
  %v324 = vunpack.c.l.b16 %v93
  %v325 = vunpack.c.l.b16 %v94
  %v326 = vunpack.c.l.b16 %v95
  %v327 = vunpack.c.l.b16 %v96
  %v328 = vunpack.c.l.b16 %v97
  %v329 = vunpack.c.l.b16 %v98
  %v330 = vunpack.c.l.b16 %v99
  %v331 = vunpack.c.l.b16 %v100
  %v332 = vunpack.c.l.b16 %v101
  %v333 = vunpack.c.l.b16 %v102
  %v334 = vunpack.c.l.b16 %v103
  %v335 = vpack.c.b16 %v320, %v319
  %v336 = vpack.c.b16 %v322, %v321
  %v337 = vpack.c.b16 %v324, %v323
  %v338 = vpack.c.b16 %v326, %v325
  %v339 = vpack.c.b16 %v328, %v327
  %v340 = vpack.c.b16 %v330, %v329
  %v341 = vpack.c.b16 %v332, %v331
  %v342 = vpack.c.b16 %v334, %v333
  %351 = vmatprep.subr.bf16.mxu0 0
  %352 = vmatpush1.bf16.msra.mxu0 %v335
  %353 = vmatprep.subr.bf16.mxu0 0
  %354 = vmatpush1.bf16.msra.mxu0 %v336
  %355 = vmatprep.subr.bf16.mxu0 0
  %356 = vmatpush1.bf16.msra.mxu0 %v337
  %357 = vmatprep.subr.bf16.mxu0 0
  %358 = vmatpush1.bf16.msra.mxu0 %v338
  %359 = vmatprep.subr.bf16.mxu0 0
  %360 = vmatpush1.bf16.msra.mxu0 %v339
  %361 = vmatprep.subr.bf16.mxu0 0
  %362 = vmatpush1.bf16.msra.mxu0 %v340
  %363 = vmatprep.subr.bf16.mxu0 0
  %364 = vmatpush1.bf16.msra.mxu0 %v341
  %365 = vmatprep.subr.bf16.mxu0 0
  %366 = vmatpush1.bf16.msra.mxu0 %v342
  %367 = vmatprep.subr.bf16.mxu0 0
  %368 = vmatpush1.bf16.msra.mxu0 0
  %369 = vmatprep.subr.bf16.mxu0 0
  %370 = vmatpush1.bf16.msra.mxu0 0
  %371 = vmatprep.subr.bf16.mxu0 0
  %372 = vmatpush1.bf16.msra.mxu0 0
  %373 = vmatprep.subr.bf16.mxu0 0
  %374 = vmatpush1.bf16.msra.mxu0 0
  %375 = vmatprep.subr.bf16.mxu0 0
  %376 = vmatpush1.bf16.msra.mxu0 0
  %377 = vmatprep.subr.bf16.mxu0 0
  %378 = vmatpush1.bf16.msra.mxu0 0
  %379 = vmatprep.subr.bf16.mxu0 0
  %380 = vmatpush1.bf16.msra.mxu0 0
  %381 = vmatprep.subr.bf16.mxu0 0
  %382 = vmatpush1.bf16.msra.mxu0 0
  %383 = vmatprep.mubr.bf16.mxu0 0
  %384 = vmatmul.mubr.bf16.gmra.mrb[0].mxu0 %v239
  %v385 = vpop.f32.mrb[0].mxu0
  %v386 = vadd.f32 %v109, %v385
  %v387 = vpop.f32.mrb[0].mxu0
  %v388 = vpop.f32.mrb[0].mxu0
  %v389 = vadd.f32 %v109, %v388
  %v390 = vpop.f32.mrb[0].mxu0
  %391 = vmatprep.mubr.bf16.mxu0 0
  %392 = vmatmul.mubr.bf16.gmra.mrb[0].mxu0 %v240
  %v393 = vpop.f32.mrb[0].mxu0
  %v394 = vadd.f32 %v109, %v393
  %v395 = vpop.f32.mrb[0].mxu0
  %v396 = vpop.f32.mrb[0].mxu0
  %v397 = vadd.f32 %v109, %v396
  %v398 = vpop.f32.mrb[0].mxu0
  %399 = vmatprep.mubr.bf16.mxu0 0
  %400 = vmatmul.mubr.bf16.gmra.mrb[0].mxu0 %v241
  %v401 = vpop.f32.mrb[0].mxu0
  %v402 = vadd.f32 %v109, %v401
  %v403 = vpop.f32.mrb[0].mxu0
  %v404 = vpop.f32.mrb[0].mxu0
  %v405 = vadd.f32 %v109, %v404
  %v406 = vpop.f32.mrb[0].mxu0
  %407 = vmatprep.mubr.bf16.mxu0 0
  %408 = vmatmul.mubr.bf16.gmra.mrb[0].mxu0 %v242
  %v409 = vpop.f32.mrb[0].mxu0
  %v410 = vadd.f32 %v109, %v409
  %v411 = vpop.f32.mrb[0].mxu0
  %v412 = vpop.f32.mrb[0].mxu0
  %v413 = vadd.f32 %v109, %v412
  %v414 = vpop.f32.mrb[0].mxu0
  %415 = vmatprep.mubr.bf16.mxu0 0
  %416 = vmatmul.mubr.bf16.gmra.mrb[0].mxu0 %v243
  %v417 = vpop.f32.mrb[0].mxu0
  %v418 = vadd.f32 %v109, %v417
  %v419 = vpop.f32.mrb[0].mxu0
  %v420 = vpop.f32.mrb[0].mxu0
  %v421 = vadd.f32 %v109, %v420
  %v422 = vpop.f32.mrb[0].mxu0
  %423 = vmatprep.mubr.bf16.mxu0 0
  %424 = vmatmul.mubr.bf16.gmra.mrb[0].mxu0 %v244
  %v425 = vpop.f32.mrb[0].mxu0
  %v426 = vadd.f32 %v109, %v425
  %v427 = vpop.f32.mrb[0].mxu0
  %v428 = vpop.f32.mrb[0].mxu0
  %v429 = vadd.f32 %v109, %v428
  %v430 = vpop.f32.mrb[0].mxu0
  %431 = vmatprep.mubr.bf16.mxu0 0
  %432 = vmatmul.mubr.bf16.gmra.mrb[0].mxu0 %v245
  %v433 = vpop.f32.mrb[0].mxu0
  %v434 = vadd.f32 %v109, %v433
  %v435 = vpop.f32.mrb[0].mxu0
  %v436 = vpop.f32.mrb[0].mxu0
  %v437 = vadd.f32 %v109, %v436
  %v438 = vpop.f32.mrb[0].mxu0
  %439 = vmatprep.mubr.bf16.mxu0 0
  %440 = vmatmul.mubr.bf16.gmra.mrb[0].mxu0 %v246
  %v441 = vpop.f32.mrb[0].mxu0
  %v442 = vadd.f32 %v109, %v441
  %v443 = vpop.f32.mrb[0].mxu0
  %v444 = vpop.f32.mrb[0].mxu0
  %v445 = vadd.f32 %v109, %v444
  %v446 = vpop.f32.mrb[0].mxu0
  %447 = vmatprep.mubr.bf16.mxu0 0
  %448 = vmatmul.mubr.bf16.gmra.mrb[0].mxu0 %v247
  %v449 = vpop.f32.mrb[0].mxu0
  %v450 = vadd.f32 %v109, %v449
  %v451 = vpop.f32.mrb[0].mxu0
  %v452 = vpop.f32.mrb[0].mxu0
  %v453 = vadd.f32 %v109, %v452
  %v454 = vpop.f32.mrb[0].mxu0
  %455 = vmatprep.mubr.bf16.mxu0 0
  %456 = vmatmul.mubr.bf16.gmra.mrb[0].mxu0 %v248
  %v457 = vpop.f32.mrb[0].mxu0
  %v458 = vadd.f32 %v109, %v457
  %v459 = vpop.f32.mrb[0].mxu0
  %v460 = vpop.f32.mrb[0].mxu0
  %v461 = vadd.f32 %v109, %v460
  %v462 = vpop.f32.mrb[0].mxu0
  %463 = vmatprep.mubr.bf16.mxu0 0
  %464 = vmatmul.mubr.bf16.gmra.mrb[0].mxu0 %v249
  %v465 = vpop.f32.mrb[0].mxu0
  %v466 = vadd.f32 %v109, %v465
  %v467 = vpop.f32.mrb[0].mxu0
  %v468 = vpop.f32.mrb[0].mxu0
  %v469 = vadd.f32 %v109, %v468
  %v470 = vpop.f32.mrb[0].mxu0
  %471 = vmatprep.mubr.bf16.mxu0 0
  %472 = vmatmul.mubr.bf16.gmra.mrb[0].mxu0 %v250
  %v473 = vpop.f32.mrb[0].mxu0
  %v474 = vadd.f32 %v109, %v473
  %v475 = vpop.f32.mrb[0].mxu0
  %v476 = vpop.f32.mrb[0].mxu0
  %v477 = vadd.f32 %v109, %v476
  %v478 = vpop.f32.mrb[0].mxu0
  %479 = vmatprep.mubr.bf16.mxu0 0
  %480 = vmatmul.mubr.bf16.gmra.mrb[0].mxu0 %v251
  %v481 = vpop.f32.mrb[0].mxu0
  %v482 = vadd.f32 %v109, %v481
  %v483 = vpop.f32.mrb[0].mxu0
  %v484 = vpop.f32.mrb[0].mxu0
  %v485 = vadd.f32 %v109, %v484
  %v486 = vpop.f32.mrb[0].mxu0
  %487 = vmatprep.mubr.bf16.mxu0 0
  %488 = vmatmul.mubr.bf16.gmra.mrb[0].mxu0 %v252
  %v489 = vpop.f32.mrb[0].mxu0
  %v490 = vadd.f32 %v109, %v489
  %v491 = vpop.f32.mrb[0].mxu0
  %v492 = vpop.f32.mrb[0].mxu0
  %v493 = vadd.f32 %v109, %v492
  %v494 = vpop.f32.mrb[0].mxu0
  %495 = vmatprep.mubr.bf16.mxu0 0
  %496 = vmatmul.mubr.bf16.gmra.mrb[0].mxu0 %v253
  %v497 = vpop.f32.mrb[0].mxu0
  %v498 = vadd.f32 %v109, %v497
  %v499 = vpop.f32.mrb[0].mxu0
  %v500 = vpop.f32.mrb[0].mxu0
  %v501 = vadd.f32 %v109, %v500
  %v502 = vpop.f32.mrb[0].mxu0
  %503 = vmatprep.mubr.bf16.mxu0 0
  %504 = vmatmul.mubr.bf16.gmra.mrb[0].mxu0 %v254
  %v505 = vpop.f32.mrb[0].mxu0
  %v506 = vadd.f32 %v109, %v505
  %v507 = vpop.f32.mrb[0].mxu0
  %v508 = vpop.f32.mrb[0].mxu0
  %v509 = vadd.f32 %v109, %v508
  %v510 = vpop.f32.mrb[0].mxu0
  %511 = vmatprep.mubr.bf16.mxu0 0
  %512 = vmatmul.mubr.bf16.gmra.mrb[0].mxu0 %v255
  %v513 = vpop.f32.mrb[0].mxu0
  %v514 = vadd.f32 %v109, %v513
  %v515 = vpop.f32.mrb[0].mxu0
  %v516 = vpop.f32.mrb[0].mxu0
  %v517 = vadd.f32 %v109, %v516
  %v518 = vpop.f32.mrb[0].mxu0
  %519 = vmatprep.mubr.bf16.mxu0 0
  %520 = vmatmul.mubr.bf16.gmra.mrb[0].mxu0 %v256
  %v521 = vpop.f32.mrb[0].mxu0
  %v522 = vadd.f32 %v109, %v521
  %v523 = vpop.f32.mrb[0].mxu0
  %v524 = vpop.f32.mrb[0].mxu0
  %v525 = vadd.f32 %v109, %v524
  %v526 = vpop.f32.mrb[0].mxu0
  %527 = vmatprep.mubr.bf16.mxu0 0
  %528 = vmatmul.mubr.bf16.gmra.mrb[0].mxu0 %v257
  %v529 = vpop.f32.mrb[0].mxu0
  %v530 = vadd.f32 %v109, %v529
  %v531 = vpop.f32.mrb[0].mxu0
  %v532 = vpop.f32.mrb[0].mxu0
  %v533 = vadd.f32 %v109, %v532
  %v534 = vpop.f32.mrb[0].mxu0
  %535 = vmatprep.mubr.bf16.mxu0 0
  %536 = vmatmul.mubr.bf16.gmra.mrb[0].mxu0 %v258
  %v537 = vpop.f32.mrb[0].mxu0
  %v538 = vadd.f32 %v109, %v537
  %v539 = vpop.f32.mrb[0].mxu0
  %v540 = vpop.f32.mrb[0].mxu0
  %v541 = vadd.f32 %v109, %v540
  %v542 = vpop.f32.mrb[0].mxu0
  %543 = vmatprep.mubr.bf16.mxu0 0
  %544 = vmatmul.mubr.bf16.gmra.mrb[0].mxu0 %v259
  %v545 = vpop.f32.mrb[0].mxu0
  %v546 = vadd.f32 %v109, %v545
  %v547 = vpop.f32.mrb[0].mxu0
  %v548 = vpop.f32.mrb[0].mxu0
  %v549 = vadd.f32 %v109, %v548
  %v550 = vpop.f32.mrb[0].mxu0
  %551 = vmatprep.mubr.bf16.mxu0 0
  %552 = vmatmul.mubr.bf16.gmra.mrb[0].mxu0 %v260
  %v553 = vpop.f32.mrb[0].mxu0
  %v554 = vadd.f32 %v109, %v553
  %v555 = vpop.f32.mrb[0].mxu0
  %v556 = vpop.f32.mrb[0].mxu0
  %v557 = vadd.f32 %v109, %v556
  %v558 = vpop.f32.mrb[0].mxu0
  %559 = vmatprep.mubr.bf16.mxu0 0
  %560 = vmatmul.mubr.bf16.gmra.mrb[0].mxu0 %v261
  %v561 = vpop.f32.mrb[0].mxu0
  %v562 = vadd.f32 %v109, %v561
  %v563 = vpop.f32.mrb[0].mxu0
  %v564 = vpop.f32.mrb[0].mxu0
  %v565 = vadd.f32 %v109, %v564
  %v566 = vpop.f32.mrb[0].mxu0
  %567 = vmatprep.mubr.bf16.mxu0 0
  %568 = vmatmul.mubr.bf16.gmra.mrb[0].mxu0 %v262
  %v569 = vpop.f32.mrb[0].mxu0
  %v570 = vadd.f32 %v109, %v569
  %v571 = vpop.f32.mrb[0].mxu0
  %v572 = vpop.f32.mrb[0].mxu0
  %v573 = vadd.f32 %v109, %v572
  %v574 = vpop.f32.mrb[0].mxu0
  %575 = vmatprep.mubr.bf16.mxu0 0
  %576 = vmatmul.mubr.bf16.gmra.mrb[0].mxu0 %v263
  %v577 = vpop.f32.mrb[0].mxu0
  %v578 = vadd.f32 %v109, %v577
  %v579 = vpop.f32.mrb[0].mxu0
  %v580 = vpop.f32.mrb[0].mxu0
  %v581 = vadd.f32 %v109, %v580
  %v582 = vpop.f32.mrb[0].mxu0
  %583 = vmatprep.mubr.bf16.mxu0 0
  %584 = vmatmul.mubr.bf16.gmra.mrb[0].mxu0 %v264
  %v585 = vpop.f32.mrb[0].mxu0
  %v586 = vadd.f32 %v109, %v585
  %v587 = vpop.f32.mrb[0].mxu0
  %v588 = vpop.f32.mrb[0].mxu0
  %v589 = vadd.f32 %v109, %v588
  %v590 = vpop.f32.mrb[0].mxu0
  %591 = vmatprep.mubr.bf16.mxu0 0
  %592 = vmatmul.mubr.bf16.gmra.mrb[0].mxu0 %v265
  %v593 = vpop.f32.mrb[0].mxu0
  %v594 = vadd.f32 %v109, %v593
  %v595 = vpop.f32.mrb[0].mxu0
  %v596 = vpop.f32.mrb[0].mxu0
  %v597 = vadd.f32 %v109, %v596
  %v598 = vpop.f32.mrb[0].mxu0
  %599 = vmatprep.mubr.bf16.mxu0 0
  %600 = vmatmul.mubr.bf16.gmra.mrb[0].mxu0 %v266
  %v601 = vpop.f32.mrb[0].mxu0
  %v602 = vadd.f32 %v109, %v601
  %v603 = vpop.f32.mrb[0].mxu0
  %v604 = vpop.f32.mrb[0].mxu0
  %v605 = vadd.f32 %v109, %v604
  %v606 = vpop.f32.mrb[0].mxu0
  %607 = vmatprep.mubr.bf16.mxu0 0
  %608 = vmatmul.mubr.bf16.gmra.mrb[0].mxu0 %v267
  %v609 = vpop.f32.mrb[0].mxu0
  %v610 = vadd.f32 %v109, %v609
  %v611 = vpop.f32.mrb[0].mxu0
  %v612 = vpop.f32.mrb[0].mxu0
  %v613 = vadd.f32 %v109, %v612
  %v614 = vpop.f32.mrb[0].mxu0
  %615 = vmatprep.mubr.bf16.mxu0 0
  %616 = vmatmul.mubr.bf16.gmra.mrb[0].mxu0 %v268
  %v617 = vpop.f32.mrb[0].mxu0
  %v618 = vadd.f32 %v109, %v617
  %v619 = vpop.f32.mrb[0].mxu0
  %v620 = vpop.f32.mrb[0].mxu0
  %v621 = vadd.f32 %v109, %v620
  %v622 = vpop.f32.mrb[0].mxu0
  %623 = vmatprep.mubr.bf16.mxu0 0
  %624 = vmatmul.mubr.bf16.gmra.mrb[0].mxu0 %v269
  %v625 = vpop.f32.mrb[0].mxu0
  %v626 = vadd.f32 %v109, %v625
  %v627 = vpop.f32.mrb[0].mxu0
  %v628 = vpop.f32.mrb[0].mxu0
  %v629 = vadd.f32 %v109, %v628
  %v630 = vpop.f32.mrb[0].mxu0
  %631 = vmatprep.mubr.bf16.mxu0 0
  %632 = vmatmul.mubr.bf16.gmra.mrb[0].mxu0 %v270
  %v633 = vpop.f32.mrb[0].mxu0
  %v634 = vadd.f32 %v109, %v633
  %v635 = vpop.f32.mrb[0].mxu0
  %v636 = vpop.f32.mrb[0].mxu0
  %v637 = vadd.f32 %v109, %v636
  %v638 = vpop.f32.mrb[0].mxu0
  %639 = vdwg.mxu0
  %v640 = vmax.f32 %v386, 0.0
  %v641 = vmax.f32 %v389, 0.0
  %v642 = vmax.f32 %v394, 0.0
  %v643 = vmax.f32 %v397, 0.0
  %v644 = vmax.f32 %v402, 0.0
  %v645 = vmax.f32 %v405, 0.0
  %v646 = vmax.f32 %v410, 0.0
  %v647 = vmax.f32 %v413, 0.0
  %v648 = vmax.f32 %v418, 0.0
  %v649 = vmax.f32 %v421, 0.0
  %v650 = vmax.f32 %v426, 0.0
  %v651 = vmax.f32 %v429, 0.0
  %v652 = vmax.f32 %v434, 0.0
  %v653 = vmax.f32 %v437, 0.0
  %v654 = vmax.f32 %v442, 0.0
  %v655 = vmax.f32 %v445, 0.0
  %v656 = vmax.f32 %v450, 0.0
  %v657 = vmax.f32 %v453, 0.0
  %v658 = vmax.f32 %v458, 0.0
  %v659 = vmax.f32 %v461, 0.0
  %v660 = vmax.f32 %v466, 0.0
  %v661 = vmax.f32 %v469, 0.0
  %v662 = vmax.f32 %v474, 0.0
  %v663 = vmax.f32 %v477, 0.0
  %v664 = vmax.f32 %v482, 0.0
  %v665 = vmax.f32 %v485, 0.0
  %v666 = vmax.f32 %v490, 0.0
  %v667 = vmax.f32 %v493, 0.0
  %v668 = vmax.f32 %v498, 0.0
  %v669 = vmax.f32 %v501, 0.0
  %v670 = vmax.f32 %v506, 0.0
  %v671 = vmax.f32 %v509, 0.0
  %v672 = vmax.f32 %v514, 0.0
  %v673 = vmax.f32 %v517, 0.0
  %v674 = vmax.f32 %v522, 0.0
  %v675 = vmax.f32 %v525, 0.0
  %v676 = vmax.f32 %v530, 0.0
  %v677 = vmax.f32 %v533, 0.0
  %v678 = vmax.f32 %v538, 0.0
  %v679 = vmax.f32 %v541, 0.0
  %v680 = vmax.f32 %v546, 0.0
  %v681 = vmax.f32 %v549, 0.0
  %v682 = vmax.f32 %v554, 0.0
  %v683 = vmax.f32 %v557, 0.0
  %v684 = vmax.f32 %v562, 0.0
  %v685 = vmax.f32 %v565, 0.0
  %v686 = vmax.f32 %v570, 0.0
  %v687 = vmax.f32 %v573, 0.0
  %v688 = vmax.f32 %v578, 0.0
  %v689 = vmax.f32 %v581, 0.0
  %v690 = vmax.f32 %v586, 0.0
  %v691 = vmax.f32 %v589, 0.0
  %v692 = vmax.f32 %v594, 0.0
  %v693 = vmax.f32 %v597, 0.0
  %v694 = vmax.f32 %v602, 0.0
  %v695 = vmax.f32 %v605, 0.0
  %v696 = vmax.f32 %v610, 0.0
  %v697 = vmax.f32 %v613, 0.0
  %v698 = vmax.f32 %v618, 0.0
  %v699 = vmax.f32 %v621, 0.0
  %v700 = vmax.f32 %v626, 0.0
  %v701 = vmax.f32 %v629, 0.0
  %v702 = vmax.f32 %v634, 0.0
  %v703 = vmax.f32 %v637, 0.0
  %v704 = vld [vmem:[%s3] sm:$0xff]
  %v705 = vld [vmem:[%s3 + $0x8] sm:$0xff]
  %v706 = vld [vmem:[%s3 + $0x10] sm:$0xff]
  %v707 = vld [vmem:[%s3 + $0x18] sm:$0xff]
  %708 = vmatprep.subr.mxu0 0.0
  %709 = vmatpush1.msra.mxu0 %v640
  %710 = vmatprep.subr.mxu0 0.0
  %711 = vmatpush1.msra.mxu0 %v641
  %712 = vmatprep.subr.mxu0 0.0
  %713 = vmatpush1.msra.mxu0 %v642
  %714 = vmatprep.subr.mxu0 0.0
  %715 = vmatpush1.msra.mxu0 %v643
  %716 = vmatprep.subr.mxu0 0.0
  %717 = vmatpush1.msra.mxu0 %v644
  %718 = vmatprep.subr.mxu0 0.0
  %719 = vmatpush1.msra.mxu0 %v645
  %720 = vmatprep.subr.mxu0 0.0
  %721 = vmatpush1.msra.mxu0 %v646
  %722 = vmatprep.subr.mxu0 0.0
  %723 = vmatpush1.msra.mxu0 %v647
  %724 = vmatprep.subr.mxu0 0.0
  %725 = vmatpush1.msra.mxu0 %v648
  %726 = vmatprep.subr.mxu0 0.0
  %727 = vmatpush1.msra.mxu0 %v649
  %728 = vmatprep.subr.mxu0 0.0
  %729 = vmatpush1.msra.mxu0 %v650
  %730 = vmatprep.subr.mxu0 0.0
  %731 = vmatpush1.msra.mxu0 %v651
  %732 = vmatprep.subr.mxu0 0.0
  %733 = vmatpush1.msra.mxu0 %v652
  %734 = vmatprep.subr.mxu0 0.0
  %735 = vmatpush1.msra.mxu0 %v653
  %736 = vmatprep.subr.mxu0 0.0
  %737 = vmatpush1.msra.mxu0 %v654
  %738 = vmatprep.subr.mxu0 0.0
  %739 = vmatpush1.msra.mxu0 %v655
  %740 = vmatprep.subr.mxu0 0.0
  %741 = vmatpush1.msra.mxu0 %v656
  %742 = vmatprep.subr.mxu0 0.0
  %743 = vmatpush1.msra.mxu0 %v657
  %744 = vmatprep.subr.mxu0 0.0
  %745 = vmatpush1.msra.mxu0 %v658
  %746 = vmatprep.subr.mxu0 0.0
  %747 = vmatpush1.msra.mxu0 %v659
  %748 = vmatprep.subr.mxu0 0.0
  %749 = vmatpush1.msra.mxu0 %v660
  %750 = vmatprep.subr.mxu0 0.0
  %751 = vmatpush1.msra.mxu0 %v661
  %752 = vmatprep.subr.mxu0 0.0
  %753 = vmatpush1.msra.mxu0 %v662
  %754 = vmatprep.subr.mxu0 0.0
  %755 = vmatpush1.msra.mxu0 %v663
  %756 = vmatprep.subr.mxu0 0.0
  %757 = vmatpush1.msra.mxu0 %v664
  %758 = vmatprep.subr.mxu0 0.0
  %759 = vmatpush1.msra.mxu0 %v665
  %760 = vmatprep.subr.mxu0 0.0
  %761 = vmatpush1.msra.mxu0 %v666
  %762 = vmatprep.subr.mxu0 0.0
  %763 = vmatpush1.msra.mxu0 %v667
  %764 = vmatprep.subr.mxu0 0.0
  %765 = vmatpush1.msra.mxu0 %v668
  %766 = vmatprep.subr.mxu0 0.0
  %767 = vmatpush1.msra.mxu0 %v669
  %768 = vmatprep.subr.mxu0 0.0
  %769 = vmatpush1.msra.mxu0 %v670
  %770 = vmatprep.subr.mxu0 0.0
  %771 = vmatpush1.msra.mxu0 %v671
  %772 = vmatprep.mubr.f32.mxu0 %v705
  %773 = vmatmul.mubr.f32.gmra.mrb[0].mxu0 %v704
  %v774 = vpop.f32.mrb[0].mxu0
  %v775 = vadd.f32 0.0, %v774
  %v776 = vpop.f32.mrb[0].mxu0
  %777 = vdwg.mxu0
  %778 = vmatprep.subr.mxu0 0.0
  %779 = vmatpush1.msra.mxu0 %v672
  %780 = vmatprep.subr.mxu0 0.0
  %781 = vmatpush1.msra.mxu0 %v673
  %782 = vmatprep.subr.mxu0 0.0
  %783 = vmatpush1.msra.mxu0 %v674
  %784 = vmatprep.subr.mxu0 0.0
  %785 = vmatpush1.msra.mxu0 %v675
  %786 = vmatprep.subr.mxu0 0.0
  %787 = vmatpush1.msra.mxu0 %v676
  %788 = vmatprep.subr.mxu0 0.0
  %789 = vmatpush1.msra.mxu0 %v677
  %790 = vmatprep.subr.mxu0 0.0
  %791 = vmatpush1.msra.mxu0 %v678
  %792 = vmatprep.subr.mxu0 0.0
  %793 = vmatpush1.msra.mxu0 %v679
  %794 = vmatprep.subr.mxu0 0.0
  %795 = vmatpush1.msra.mxu0 %v680
  %796 = vmatprep.subr.mxu0 0.0
  %797 = vmatpush1.msra.mxu0 %v681
  %798 = vmatprep.subr.mxu0 0.0
  %799 = vmatpush1.msra.mxu0 %v682
  %800 = vmatprep.subr.mxu0 0.0
  %801 = vmatpush1.msra.mxu0 %v683
  %802 = vmatprep.subr.mxu0 0.0
  %803 = vmatpush1.msra.mxu0 %v684
  %804 = vmatprep.subr.mxu0 0.0
  %805 = vmatpush1.msra.mxu0 %v685
  %806 = vmatprep.subr.mxu0 0.0
  %807 = vmatpush1.msra.mxu0 %v686
  %808 = vmatprep.subr.mxu0 0.0
  %809 = vmatpush1.msra.mxu0 %v687
  %810 = vmatprep.subr.mxu0 0.0
  %811 = vmatpush1.msra.mxu0 %v688
  %812 = vmatprep.subr.mxu0 0.0
  %813 = vmatpush1.msra.mxu0 %v689
  %814 = vmatprep.subr.mxu0 0.0
  %815 = vmatpush1.msra.mxu0 %v690
  %816 = vmatprep.subr.mxu0 0.0
  %817 = vmatpush1.msra.mxu0 %v691
  %818 = vmatprep.subr.mxu0 0.0
  %819 = vmatpush1.msra.mxu0 %v692
  %820 = vmatprep.subr.mxu0 0.0
  %821 = vmatpush1.msra.mxu0 %v693
  %822 = vmatprep.subr.mxu0 0.0
  %823 = vmatpush1.msra.mxu0 %v694
  %824 = vmatprep.subr.mxu0 0.0
  %825 = vmatpush1.msra.mxu0 %v695
  %826 = vmatprep.subr.mxu0 0.0
  %827 = vmatpush1.msra.mxu0 %v696
  %828 = vmatprep.subr.mxu0 0.0
  %829 = vmatpush1.msra.mxu0 %v697
  %830 = vmatprep.subr.mxu0 0.0
  %831 = vmatpush1.msra.mxu0 %v698
  %832 = vmatprep.subr.mxu0 0.0
  %833 = vmatpush1.msra.mxu0 %v699
  %834 = vmatprep.subr.mxu0 0.0
  %835 = vmatpush1.msra.mxu0 %v700
  %836 = vmatprep.subr.mxu0 0.0
  %837 = vmatpush1.msra.mxu0 %v701
  %838 = vmatprep.subr.mxu0 0.0
  %839 = vmatpush1.msra.mxu0 %v702
  %840 = vmatprep.subr.mxu0 0.0
  %841 = vmatpush1.msra.mxu0 %v703
  %842 = vmatprep.mubr.f32.mxu0 %v707
  %843 = vmatmul.mubr.f32.gmra.mrb[0].mxu0 %v706
  %v844 = vpop.f32.mrb[0].mxu0
  %v845 = vadd.f32 %v775, %v844
  %v846 = vpop.f32.mrb[0].mxu0
  %847 = vdwg.mxu0
  %v848 = vld [vmem:[%s4] sm:$0xff]
  %v849 = vld [vmem:[%s4 + $0x8] sm:$0xff]
  %v850 = vld [vmem:[%s4 + $0x10] sm:$0xff]
  %v851 = vld [vmem:[%s4 + $0x18] sm:$0xff]
  %v852 = vld [vmem:[%s4 + $0x20] sm:$0xff]
  %v853 = vld [vmem:[%s4 + $0x28] sm:$0xff]
  %v854 = vld [vmem:[%s4 + $0x30] sm:$0xff]
  %v855 = vld [vmem:[%s4 + $0x38] sm:$0xff]
  %v856 = vld [vmem:[%s4 + $0x40] sm:$0xff]
  %v857 = vld [vmem:[%s4 + $0x48] sm:$0xff]
  %v858 = vld [vmem:[%s4 + $0x50] sm:$0xff]
  %v859 = vld [vmem:[%s4 + $0x58] sm:$0xff]
  %v860 = vld [vmem:[%s4 + $0x60] sm:$0xff]
  %v861 = vld [vmem:[%s4 + $0x68] sm:$0xff]
  %v862 = vld [vmem:[%s4 + $0x70] sm:$0xff]
  %v863 = vld [vmem:[%s4 + $0x78] sm:$0xff]
  %v864 = vld [vmem:[%s5] sm:$0x1]
  %v866 = vlaneseq
  %v867 = vshrl.u32 %v866, 7
  %v868 = vsub.s32 0, %v867
  %v869 = vrot.slane %v864, %v868
  %871 = vmatprep.subr.mxu0 0.0
  %872 = vmatpush1.msra.mxu0 %v848
  %873 = vmatprep.subr.mxu0 0.0
  %874 = vmatpush1.msra.mxu0 %v849
  %875 = vmatprep.subr.mxu0 0.0
  %876 = vmatpush1.msra.mxu0 %v850
  %877 = vmatprep.subr.mxu0 0.0
  %878 = vmatpush1.msra.mxu0 %v851
  %879 = vmatprep.subr.mxu0 0.0
  %880 = vmatpush1.msra.mxu0 %v852
  %881 = vmatprep.subr.mxu0 0.0
  %882 = vmatpush1.msra.mxu0 %v853
  %883 = vmatprep.subr.mxu0 0.0
  %884 = vmatpush1.msra.mxu0 %v854
  %885 = vmatprep.subr.mxu0 0.0
  %886 = vmatpush1.msra.mxu0 %v855
  %887 = vmatprep.subr.mxu0 0.0
  %888 = vmatpush1.msra.mxu0 %v856
  %889 = vmatprep.subr.mxu0 0.0
  %890 = vmatpush1.msra.mxu0 %v857
  %891 = vmatprep.subr.mxu0 0.0
  %892 = vmatpush1.msra.mxu0 %v858
  %893 = vmatprep.subr.mxu0 0.0
  %894 = vmatpush1.msra.mxu0 %v859
  %895 = vmatprep.subr.mxu0 0.0
  %896 = vmatpush1.msra.mxu0 %v860
  %897 = vmatprep.subr.mxu0 0.0
  %898 = vmatpush1.msra.mxu0 %v861
  %899 = vmatprep.subr.mxu0 0.0
  %900 = vmatpush1.msra.mxu0 %v862
  %901 = vmatprep.subr.mxu0 0.0
  %902 = vmatpush1.msra.mxu0 %v863
  %903 = vmatprep.subr.mxu0 0.0
  %904 = vmatpush1.msra.mxu0 0.0
  %905 = vmatprep.subr.mxu0 0.0
  %906 = vmatpush1.msra.mxu0 0.0
  %907 = vmatprep.subr.mxu0 0.0
  %908 = vmatpush1.msra.mxu0 0.0
  %909 = vmatprep.subr.mxu0 0.0
  %910 = vmatpush1.msra.mxu0 0.0
  %911 = vmatprep.subr.mxu0 0.0
  %912 = vmatpush1.msra.mxu0 0.0
  %913 = vmatprep.subr.mxu0 0.0
  %914 = vmatpush1.msra.mxu0 0.0
  %915 = vmatprep.subr.mxu0 0.0
  %916 = vmatpush1.msra.mxu0 0.0
  %917 = vmatprep.subr.mxu0 0.0
  %918 = vmatpush1.msra.mxu0 0.0
  %919 = vmatprep.subr.mxu0 0.0
  %920 = vmatpush1.msra.mxu0 0.0
  %921 = vmatprep.subr.mxu0 0.0
  %922 = vmatpush1.msra.mxu0 0.0
  %923 = vmatprep.subr.mxu0 0.0
  %924 = vmatpush1.msra.mxu0 0.0
  %925 = vmatprep.subr.mxu0 0.0
  %926 = vmatpush1.msra.mxu0 0.0
  %927 = vmatprep.subr.mxu0 0.0
  %928 = vmatpush1.msra.mxu0 0.0
  %929 = vmatprep.subr.mxu0 0.0
  %930 = vmatpush1.msra.mxu0 0.0
  %931 = vmatprep.subr.mxu0 0.0
  %932 = vmatpush1.msra.mxu0 0.0
  %933 = vmatprep.subr.mxu0 0.0
  %934 = vmatpush1.msra.mxu0 0.0
  %935 = vmatprep.mubr.f32.mxu0 0.0
  %936 = vmatmul.mubr.f32.gmra.mrb[0].mxu0 %v845
  %v937 = vpop.f32.mrb[0].mxu0
  %v938 = vadd.f32 %v869, %v937
  %v939 = vpop.f32.mrb[0].mxu0
  %940 = vdwg.mxu0
  %941 = vst [vmem:[%s6] sm:$0xff] %v938
  // Predicated region
  $region26: #{ensemble_forward.1} parent=0 // pred_check
    _
  $region27: #{ensemble_forward.1} parent=0 // pred_check_branch
    %943 = sbr.rel (0) target = $region29
  $region28: #{ensemble_forward.1} parent=0 // pred_region
    _
  $region29: #{ensemble_forward.1} parent=0 // pred_fallthru
    _
  // Predicated region
  $region30: #{ensemble_forward.1} parent=0 // pred_check
    _
  $region31: #{ensemble_forward.1} parent=0 // pred_check_branch
    %945 = sbr.rel (0) target = $region33
  $region32: #{ensemble_forward.1} parent=0 // pred_region
    _
  $region33: #{ensemble_forward.1} parent=0 // pred_fallthru
    _

</llo_original>
